<compile_context>
chip_gen: v6e
topology: v6e:2x2x1
jax: 0.10.0
libtpu: 0.0.40
codegen_flags: <defaults>
</compile_context>

<pallas_src>
import functools
import math

import jax
import jax.numpy as jnp
from jax import lax
from jax.experimental import pallas as pl
from jax.experimental.pallas import tpu as pltpu

LANE = 128


def _round_up(x, m):
    return (x + m - 1) // m * m


def _vmem_limit_bytes():
    """Generation-aware VMEM budget (leave headroom for Mosaic scratch)."""
    try:
        kind = jax.devices()[0].device_kind.lower()
    except Exception:
        kind = ""
    if "v7" in kind:
        return 48 << 20      # v7x: 64 MiB physical per TC -> leave headroom
    if kind:
        return 100 << 20     # v5e / v6e: 128 MiB physical
    return 48 << 20          # unknown -> conservative


# ----------------------------------------------------------------------------
# Block-sparse, row-tiled SpMM kernel:
#   out[i-tile] = [relu]( sum_{k in nz(i)} A[i-tile, k-tile] @ XW[k-tile, :] + b )
# kidx_ref[i, j] : j-th nonzero K-block index of row block i (tail repeats last)
# count_ref[i]   : number of nonzero K blocks of row block i
# ----------------------------------------------------------------------------
def _gcn_spmm_kernel(kidx_ref, count_ref, a_ref, xw_ref, b_ref, o_ref, acc_ref,
                     *, tile_k, apply_relu, xw_resident):
    i = pl.program_id(0)
    j = pl.program_id(1)

    @pl.when(j == 0)
    def _():
        acc_ref[...] = jnp.zeros_like(acc_ref)

    @pl.when(j < count_ref[i])
    def _():
        if xw_resident:
            k = kidx_ref[i, j]
            start = pl.multiple_of(k * tile_k, tile_k)
            xw_blk = xw_ref[pl.ds(start, tile_k), :]
        else:
            xw_blk = xw_ref[...]
        acc_ref[...] += jnp.dot(a_ref[...], xw_blk,
                                preferred_element_type=jnp.float32)

    @pl.when(j == pl.num_programs(1) - 1)
    def _():
        h = acc_ref[...] + b_ref[...]
        if apply_relu:
            h = jnp.maximum(h, 0.0)
        o_ref[...] = h.astype(o_ref.dtype)


def _gcn_spmm_layer(a_bf, xw_bf, b_pad, kidx, count, k_steps, *,
                    apply_relu, tile_n, tile_k, out_dtype, vmem_limit):
    n_pad = a_bf.shape[0]
    c_out = xw_bf.shape[1]
    nb_i = n_pad // tile_n

    # Keep XW resident in VMEM unless it would blow the budget.
    out_itemsize = jnp.dtype(out_dtype).itemsize
    resident_need = (2 * n_pad * c_out * 2          # XW (assume double-buffered)
                     + 2 * tile_n * tile_k * 2      # A tiles (double-buffered)
                     + tile_n * c_out * 4           # f32 accumulator
                     + 2 * tile_n * c_out * out_itemsize  # output tiles
                     + (1 << 20))                   # slack
    xw_resident = resident_need <= int(vmem_limit * 0.8)

    if xw_resident:
        xw_spec = pl.BlockSpec((n_pad, c_out), lambda i, j, kidx, count: (0, 0))
    else:
        # Streamed XW also follows the compacted nonzero K-block list, so zero
        # blocks are skipped here as well; repeated indices elide the DMA.
        xw_spec = pl.BlockSpec((tile_k, c_out),
                               lambda i, j, kidx, count: (kidx[i, j], 0))

    kernel = functools.partial(_gcn_spmm_kernel, tile_k=tile_k,
                               apply_relu=apply_relu, xw_resident=xw_resident)
    return pl.pallas_call(
        kernel,
        out_shape=jax.ShapeDtypeStruct((n_pad, c_out), out_dtype),
        grid_spec=pltpu.PrefetchScalarGridSpec(
            num_scalar_prefetch=2,
            grid=(nb_i, k_steps),
            in_specs=[
                # A tile: data-dependent (block-sparse) K-block index.
                pl.BlockSpec((tile_n, tile_k),
                             lambda i, j, kidx, count: (i, kidx[i, j])),
                xw_spec,
                pl.BlockSpec((1, c_out), lambda i, j, kidx, count: (0, 0)),
            ],
            out_specs=pl.BlockSpec((tile_n, c_out),
                                   lambda i, j, kidx, count: (i, 0)),
            scratch_shapes=[pltpu.VMEM((tile_n, c_out), jnp.float32)],
        ),
        compiler_params=pltpu.CompilerParams(
            dimension_semantics=("parallel", "arbitrary"),
            vmem_limit_bytes=vmem_limit,
        ),
    )(kidx, count, a_bf, xw_bf, b_pad)


# ----------------------------------------------------------------------------
# Glue: normalized adjacency (built directly in the padded buffer) + metadata
# ----------------------------------------------------------------------------
def build_normalized_adjacency_padded(edge_index, num_nodes, n_pad):
    """A_hat = D^-1/2 (A + I) D^-1/2, built in one pass into a padded buffer."""
    src, dst = edge_index[0], edge_index[1]
    a = jnp.zeros((n_pad, n_pad), jnp.float32)
    a = a.at[dst, src].add(1.0)                       # duplicate edges sum (gcn_norm)
    diag = jnp.arange(num_nodes)
    a = a.at[diag, diag].add(1.0)                     # self loops on real nodes only
    deg = jnp.sum(a, axis=1)                          # padded rows/cols stay zero
    d_inv_sqrt = jnp.where(deg > 0, lax.rsqrt(deg), 0.0)
    return a * d_inv_sqrt[:, None] * d_inv_sqrt[None, :]


def _block_sparsity(a_pad, tile_n, tile_k):
    """Per row block: compacted ascending list of nonzero K blocks + its length.
    The tail of the list repeats the last valid index so skipped grid steps map
    to an unchanged block index (DMA elided)."""
    n_pad = a_pad.shape[0]
    nb_i, nb_k = n_pad // tile_n, n_pad // tile_k
    blocks = a_pad.reshape(nb_i, tile_n, nb_k, tile_k)
    nz = jnp.any(blocks != 0, axis=(1, 3))                       # [nb_i, nb_k]
    count = jnp.sum(nz, axis=1).astype(jnp.int32)                # [nb_i]
    ks = jnp.arange(nb_k, dtype=jnp.int32)
    key = jnp.where(nz, ks[None, :], nb_k + ks[None, :])
    order = jnp.argsort(key, axis=1).astype(jnp.int32)           # nonzero first
    j = jnp.arange(nb_k, dtype=jnp.int32)
    j_clip = jnp.minimum(j[None, :], jnp.maximum(count[:, None] - 1, 0))
    kidx = jnp.take_along_axis(order, j_clip, axis=1).astype(jnp.int32)
    return kidx, count


def _pad_params(params):
    """Zero-pad conv weights/biases to lane-dense (multiple-of-128) shapes."""
    convs = list(params["convs"]) + [params["out_conv"]]
    layers = []
    for idx, (w, b) in enumerate(convs):
        c_in, c_out = w.shape
        c_in_p, c_out_p = _round_up(c_in, LANE), _round_up(c_out, LANE)
        w_p = jnp.zeros((c_in_p, c_out_p), jnp.float32).at[:c_in, :c_out].set(w)
        b_p = jnp.zeros((1, c_out_p), jnp.float32).at[0, :c_out].set(b)
        layers.append((w_p.astype(jnp.bfloat16), b_p, idx < len(convs) - 1))
    return layers


# ----------------------------------------------------------------------------
# GCN forward
# ----------------------------------------------------------------------------
def gcn_forward(x, edge_index, params, *, tile_n=512, tile_k=512):
    # TODO(synk): GFN EdgeSelector sampling, training-mode dropout (p=0.5) and the
    # use_gdc (normalize=False) variant are stochastic / preprocessing logic with
    # no tensor-kernel equivalent here; eval-mode normalized forward only.
    n, in_c = x.shape
    out_c = params["out_conv"][0].shape[1]

    layers = _pad_params(params)
    in_c_p = layers[0][0].shape[0]

    tile_n = min(tile_n, _round_up(n, LANE))
    tile_k = min(tile_k, _round_up(n, LANE))
    n_pad = _round_up(n, math.lcm(tile_n, tile_k))
    nb_k = n_pad // tile_k

    # Build + normalize + pad + cast A_hat (one O(N^2) f32 temp, then bf16).
    a_hat = build_normalized_adjacency_padded(edge_index, n, n_pad)
    a_bf = a_hat.astype(jnp.bfloat16)

    # Block-sparsity metadata (shared by all layers; A is fixed).
    kidx, count = _block_sparsity(a_hat, tile_n, tile_k)
    try:
        k_steps = max(int(jnp.max(count)), 1)   # eager: trim all-zero tail steps
    except Exception:
        k_steps = nb_k                          # under jit: static upper bound
    del a_hat

    x_pad = jnp.zeros((n_pad, in_c_p), jnp.float32).at[:n, :in_c].set(x)

    vmem_limit = _vmem_limit_bytes()
    h = x_pad.astype(jnp.bfloat16)
    for (w_bf, b_pad, apply_relu) in layers:
        # X @ W hoisted out of the Pallas grid: one XLA matmul per layer.
        xw = jnp.dot(h, w_bf, preferred_element_type=jnp.float32).astype(jnp.bfloat16)
        out_dtype = jnp.bfloat16 if apply_relu else jnp.float32
        h = _gcn_spmm_layer(a_bf, xw, b_pad, kidx, count, k_steps,
                            apply_relu=apply_relu, tile_n=tile_n, tile_k=tile_k,
                            out_dtype=out_dtype, vmem_limit=vmem_limit)

    return h[:n, :out_c]


def init_params(key, in_channels, hidden_channels, out_channels, num_layers):
    def glorot(k, shape):
        fan_in, fan_out = shape
        limit = jnp.sqrt(6.0 / (fan_in + fan_out))
        return jax.random.uniform(k, shape, jnp.float32, -limit, limit)

    keys = jax.random.split(key, 2 * num_layers)
    convs = [(glorot(keys[0], (in_channels, hidden_channels)),
              0.1 * jax.random.normal(keys[1], (hidden_channels,), jnp.float32))]
    for i in range(num_layers - 2):
        convs.append((glorot(keys[2 + 2 * i], (hidden_channels, hidden_channels)),
                      0.1 * jax.random.normal(keys[3 + 2 * i], (hidden_channels,),
                                              jnp.float32)))
    out_conv = (glorot(keys[-2], (hidden_channels, out_channels)),
                0.1 * jax.random.normal(keys[-1], (out_channels,), jnp.float32))
    return {"convs": convs, "out_conv": out_conv}


# ----------------------------------------------------------------------------
# Pure-JAX references
# ----------------------------------------------------------------------------
def gcn_forward_ref(x, edge_index, params, *, mixed=True):
    """mixed=True mimics the kernel's bf16-input / f32-accumulate numerics."""
    n = x.shape[0]
    a = build_normalized_adjacency_padded(edge_index, n, n)
    if mixed:
        a = a.astype(jnp.bfloat16)
    convs = list(params["convs"]) + [params["out_conv"]]
    h = x
    for i, (w, b) in enumerate(convs):
        if mixed:
            xw = jnp.dot(h.astype(jnp.bfloat16), w.astype(jnp.bfloat16),
                         preferred_element_type=jnp.float32)
            h = jnp.dot(a, xw.astype(jnp.bfloat16),
                        preferred_element_type=jnp.float32) + b
        else:
            h = a @ (h @ w) + b
        if i < len(convs) - 1:
            h = jnp.maximum(h, 0.0)
    return h


if __name__ == "__main__":
    N, IN_C, HID_C, OUT_C, NUM_LAYERS, E = 64, 8, 32, 8, 3, 256

    key = jax.random.PRNGKey(0)
    k_x, k_e, k_p, k_x2, k_e2, k_e3 = jax.random.split(key, 6)

    # --- small graph: grid (1,1), everything resident --------------------------
    x = jax.random.normal(k_x, (N, IN_C), jnp.float32)
    src = jax.random.randint(k_e, (E,), 0, N, dtype=jnp.int32)
    dst = jax.random.randint(jax.random.fold_in(k_e, 1), (E,), 0, N, dtype=jnp.int32)
    edge_index = jnp.stack([src, dst], axis=0)   # [2, E]

    params = init_params(k_p, IN_C, HID_C, OUT_C, NUM_LAYERS)

    out = jax.block_until_ready(gcn_forward(x, edge_index, params))
    ref_mixed = gcn_forward_ref(x, edge_index, params, mixed=True)
    ref_f32 = gcn_forward_ref(x, edge_index, params, mixed=False)
    assert out.shape == (N, OUT_C)
    assert jnp.allclose(out, ref_mixed, atol=2e-2, rtol=2e-2)
    assert jnp.allclose(out, ref_f32, atol=1e-1, rtol=1e-1)

    # --- banded graph: exercises block-sparse K-block skipping -----------------
    N2, E2 = 512, 4096
    x2 = jax.random.normal(k_x2, (N2, IN_C), jnp.float32)
    src2 = jax.random.randint(k_e2, (E2,), 0, N2, dtype=jnp.int32)
    off2 = jax.random.randint(jax.random.fold_in(k_e2, 1), (E2,), -16, 17,
                              dtype=jnp.int32)
    dst2 = jnp.clip(src2 + off2, 0, N2 - 1)
    edge_index2 = jnp.stack([src2, dst2], axis=0)

    out2 = jax.block_until_ready(
        gcn_forward(x2, edge_index2, params, tile_n=128, tile_k=128))
    ref2 = gcn_forward_ref(x2, edge_index2, params, mixed=True)
    assert out2.shape == (N2, OUT_C)
    assert jnp.allclose(out2, ref2, atol=2e-2, rtol=2e-2)

    # --- dense-ish random graph: full multi-K accumulation path ----------------
    src3 = jax.random.randint(k_e3, (E2,), 0, N2, dtype=jnp.int32)
    dst3 = jax.random.randint(jax.random.fold_in(k_e3, 1), (E2,), 0, N2,
                              dtype=jnp.int32)
    edge_index3 = jnp.stack([src3, dst3], axis=0)

    out3 = jax.block_until_ready(
        gcn_forward(x2, edge_index3, params, tile_n=128, tile_k=128))
    ref3 = gcn_forward_ref(x2, edge_index3, params, mixed=True)
    assert out3.shape == (N2, OUT_C)
    assert jnp.allclose(out3, ref3, atol=2e-2, rtol=2e-2)

    print("KERNEL_OK")
</pallas_src>

<mosaic_0001>
module attributes {stable_mosaic.version = 11 : i64} {
  func.func @_gcn_spmm_kernel(%arg0: i32, %arg1: i32, %arg2: memref<1x1xi32, #tpu.memory_space<smem>>, %arg3: memref<1xi32, #tpu.memory_space<smem>>, %arg4: memref<128x128xbf16, #tpu.memory_space<vmem>>, %arg5: memref<128x128xbf16, #tpu.memory_space<vmem>>, %arg6: memref<1x128xf32, #tpu.memory_space<vmem>>, %arg7: memref<128x128xbf16, #tpu.memory_space<vmem>>, %arg8: memref<128x128xf32, #tpu.memory_space<vmem>>) attributes {dimension_semantics = [#tpu.dimension_semantics<parallel>, #tpu.dimension_semantics<arbitrary>], iteration_bounds = array<i64: 1, 1>, scalar_prefetch = 2 : i64, scratch_operands = 1 : i64, tpu.core_type = #tpu.core_type<tc>, window_params = [{transform_indices = @transform_0, window_bounds = array<i64: 128, 128>}, {pipeline_mode = #tpu.pipeline_mode<synchronous>, transform_indices = @transform_1, window_bounds = array<i64: 128, 128>}, {pipeline_mode = #tpu.pipeline_mode<synchronous>, transform_indices = @transform_2, window_bounds = array<i64: 1, 128>}, {transform_indices = @transform_3, window_bounds = array<i64: 128, 128>}]} {
    %c0_i32 = arith.constant 0 : i32
    %0 = arith.cmpi eq, %arg1, %c0_i32 : i32
    %1 = arith.extui %0 : i1 to i32
    %c0_i32_0 = arith.constant 0 : i32
    %2 = arith.cmpi ne, %1, %c0_i32_0 : i32
    scf.if %2 {
      %cst = arith.constant 0.000000e+00 : f32
      %11 = vector.broadcast %cst : f32 to vector<128x128xf32>
      %c0 = arith.constant 0 : index
      %c0_4 = arith.constant 0 : index
      %12 = vector.load %arg8[%c0, %c0_4] : memref<128x128xf32, #tpu.memory_space<vmem>>, vector<128x128xf32>
      tpu.vector_store %arg8[%c0, %c0_4], %11 {strides = array<i32>} : memref<128x128xf32, #tpu.memory_space<vmem>>, vector<128x128xf32>,
    } else {
    }
    %3 = arith.index_cast %arg0 : i32 to index
    %4 = memref.load %arg3[%3] : memref<1xi32, #tpu.memory_space<smem>>
    %5 = arith.cmpi slt, %arg1, %4 : i32
    %6 = arith.extui %5 : i1 to i32
    %c0_i32_1 = arith.constant 0 : i32
    %7 = arith.cmpi ne, %6, %c0_i32_1 : i32
    scf.if %7 {
      %11 = arith.index_cast %arg0 : i32 to index
      %12 = arith.index_cast %arg1 : i32 to index
      %13 = memref.load %arg2[%11, %12] : memref<1x1xi32, #tpu.memory_space<smem>>
      %c128_i32 = arith.constant 128 : i32
      %14 = arith.muli %13, %c128_i32 : i32
      %15 = tpu.assume_multiple %14, 128 : i32
      %16 = arith.index_cast %15 : i32 to index
      %c0 = arith.constant 0 : index
      %17 = vector.load %arg5[%16, %c0] : memref<128x128xbf16, #tpu.memory_space<vmem>>, vector<128x128xbf16>
      %c0_4 = arith.constant 0 : index
      %c0_5 = arith.constant 0 : index
      %18 = vector.load %arg8[%c0_4, %c0_5] : memref<128x128xf32, #tpu.memory_space<vmem>>, vector<128x128xf32>
      %c0_6 = arith.constant 0 : index
      %c0_7 = arith.constant 0 : index
      %19 = vector.load %arg4[%c0_6, %c0_7] : memref<128x128xbf16, #tpu.memory_space<vmem>>, vector<128x128xbf16>
      %cst = arith.constant dense<0.000000e+00> : vector<128x128xf32>
      %20 = tpu.matmul %19, %17, %cst {dimension_numbers = #tpu.dot_dimension_numbers<[1], [0], [0], [1], [0, 0, 1, 1], [], []>} : vector<128x128xbf16>, vector<128x128xbf16>, vector<128x128xf32> -> vector<128x128xf32>
      %21 = arith.addf %18, %20 : vector<128x128xf32>
      %c0_8 = arith.constant 0 : index
      %c0_9 = arith.constant 0 : index
      %22 = vector.load %arg8[%c0_8, %c0_9] : memref<128x128xf32, #tpu.memory_space<vmem>>, vector<128x128xf32>
      tpu.vector_store %arg8[%c0_8, %c0_9], %21 {strides = array<i32>} : memref<128x128xf32, #tpu.memory_space<vmem>>, vector<128x128xf32>,
    } else {
    }
    %c0_i32_2 = arith.constant 0 : i32
    %8 = arith.cmpi eq, %arg1, %c0_i32_2 : i32
    %9 = arith.extui %8 : i1 to i32
    %c0_i32_3 = arith.constant 0 : i32
    %10 = arith.cmpi ne, %9, %c0_i32_3 : i32
    scf.if %10 {
      %c0 = arith.constant 0 : index
      %c0_4 = arith.constant 0 : index
      %11 = vector.load %arg8[%c0, %c0_4] : memref<128x128xf32, #tpu.memory_space<vmem>>, vector<128x128xf32>
      %c0_5 = arith.constant 0 : index
      %c0_6 = arith.constant 0 : index
      %12 = vector.load %arg6[%c0_5, %c0_6] : memref<1x128xf32, #tpu.memory_space<vmem>>, vector<1x128xf32>
      %13 = vector.broadcast %12 : vector<1x128xf32> to vector<128x128xf32>
      %14 = arith.addf %11, %13 : vector<128x128xf32>
      %cst = arith.constant 0.000000e+00 : f32
      %15 = vector.broadcast %cst : f32 to vector<128x128xf32>
      %16 = arith.maximumf %14, %15 : vector<128x128xf32>
      %17 = arith.truncf %16 : vector<128x128xf32> to vector<128x128xbf16>
      %c0_7 = arith.constant 0 : index
      %c0_8 = arith.constant 0 : index
      %18 = vector.load %arg7[%c0_7, %c0_8] : memref<128x128xbf16, #tpu.memory_space<vmem>>, vector<128x128xbf16>
      tpu.vector_store %arg7[%c0_7, %c0_8], %17 {strides = array<i32>} : memref<128x128xbf16, #tpu.memory_space<vmem>>, vector<128x128xbf16>,
    } else {
    }
    return
  }
  func.func @transform_0(%arg0: i32, %arg1: i32, %arg2: memref<1x1xi32, #tpu.memory_space<smem>>, %arg3: memref<1xi32, #tpu.memory_space<smem>>) -> (i32, i32) {
    %0 = arith.index_cast %arg0 : i32 to index
    %1 = arith.index_cast %arg1 : i32 to index
    %2 = memref.load %arg2[%0, %1] : memref<1x1xi32, #tpu.memory_space<smem>>
    %c0_i32 = arith.constant 0 : i32
    return %arg0, %2 : i32, i32
  }
  func.func @transform_1(%arg0: i32, %arg1: i32, %arg2: memref<1x1xi32, #tpu.memory_space<smem>>, %arg3: memref<1xi32, #tpu.memory_space<smem>>) -> (i32, i32) {
    %c0_i32 = arith.constant 0 : i32
    %c0_i32_0 = arith.constant 0 : i32
    %c0_i32_1 = arith.constant 0 : i32
    return %c0_i32, %c0_i32_0 : i32, i32
  }
  func.func @transform_2(%arg0: i32, %arg1: i32, %arg2: memref<1x1xi32, #tpu.memory_space<smem>>, %arg3: memref<1xi32, #tpu.memory_space<smem>>) -> (i32, i32) {
    %c0_i32 = arith.constant 0 : i32
    %c0_i32_0 = arith.constant 0 : i32
    %c0_i32_1 = arith.constant 0 : i32
    return %c0_i32, %c0_i32_0 : i32, i32
  }
  func.func @transform_3(%arg0: i32, %arg1: i32, %arg2: memref<1x1xi32, #tpu.memory_space<smem>>, %arg3: memref<1xi32, #tpu.memory_space<smem>>) -> (i32, i32) {
    %c0_i32 = arith.constant 0 : i32
    %c0_i32_0 = arith.constant 0 : i32
    return %arg0, %c0_i32 : i32, i32
  }
}

</mosaic_0001>

<llo_original>
// kernel: tpu_custom_call.1
$region0: #{tpu_custom_call.1}
  #allocation0 [shape = 'u32[]', space=smem, size = 0x4, offset = 0x4, fixed_abs, tag = 'smem constant byte address 0x4 - core index']
  #allocation1 [shape = 'u32[144,128]{1,0:T(1,128)}', space=vmem, size = 0x12000, scoped, tag = 'internal scratch']
  #allocation2 [shape = 'f32[128,128]{1,0:T(8,128)}', space=vmem, size = 0x10000, scoped, tag = 'scratch operand']
  #allocation3 [shape = 's32[1]{0}', space=sflag, size = 0x4, scoped, tag = 'scoped memory for tpu_custom_call.1']
  #allocation4 [shape = 's32[1,1]{1,0:T(1,128)S(6)}', space=smem, size = 0x200, scoped, tag = 'prefetched SMEM operand 0']
  #allocation5 [shape = 's32[1]{0:T(128)S(6)}', space=smem, size = 0x200, scoped, tag = 'prefetched SMEM operand 1']
  %s0 = inlined_call_operand.<no memory space> [shape: s32[1,1], index: 0, kind: input, shape index: {}]
  %s1 = inlined_call_operand.<no memory space> [shape: s32[1], index: 1, kind: input, shape index: {}]
  %s2 = inlined_call_operand.hbm [shape: bf16[128,128], index: 2, kind: input, shape index: {}]
  %s3 = inlined_call_operand.hbm [shape: bf16[128,128], index: 3, kind: input, shape index: {}]
  %s4 = inlined_call_operand.vmem [shape: f32[1,128], index: 4, kind: input, shape index: {}]
  %s5 = inlined_call_operand.hbm [shape: bf16[128,128], index: 5, kind: output, shape index: {}]
  %s6 = sld [smem:[#allocation0]]
  $region42: #{tpu_custom_call.1} parent=0
    _
  %s8 = ssub.s32 1, %s6
  %s9 = scalar_select 0, %s8, %s6
  %10 = sst [smem:[#allocation4]] %s0
  %11 = sst [smem:[#allocation5]] %s1
  $region1: #{tpu_custom_call.1} parent=0
    #allocation6 [shape = 'u8[32768]{0}', space=vmem, size = 0x8000, scoped, tag = 'input window, operand 2, single buffered']
    #allocation7 [shape = 's32[1]{0}', space=sflag, size = 0x4, scoped, tag = 'scoped memory for tpu_custom_call.1']
    #allocation8 [shape = 's32[1]{0}', space=sflag, size = 0x4, scoped, tag = 'scoped memory for tpu_custom_call.1']
    #allocation9 [shape = 'u8[32768]{0}', space=vmem, size = 0x8000, scoped, tag = 'input window, operand 3, single buffered']
    #allocation10 [shape = 's32[1]{0}', space=sflag, size = 0x4, scoped, tag = 'scoped memory for tpu_custom_call.1']
    #allocation11 [shape = 'u8[32768]{0}', space=vmem, size = 0x8000, scoped, tag = 'output window, operand 0, single buffered']
    %12 = vsyncpa [#allocation7], 0
    %13 = vsyncpa [#allocation10], 0
    %14 = vsyncpa [#allocation8], 0
    // Predicated region
    $region2: #{tpu_custom_call.1} parent=1 // pred_check
      _
    $region3: #{tpu_custom_call.1} parent=1 // pred_check_branch
      %16 = sbr.rel (0) target = $region5
    $region4: #{tpu_custom_call.1} parent=1 // pred_region
      %s17 = sadd.s32 0, 0
      %s18 = smul.u32 %s17, 128
      %s19 = sadd.s32 %s18, 0
      %s20 = sld [smem:[#allocation4 + %s19]]
      %s22 = ssub.s32 1024, 1024
      %23 = vsyncadd [#allocation7], %s22
      %s24 = smul.addr %s20, 64
      %s25 = scalar_lea.hbm %s2, %s24
      %s26 = sshll.u32 [#allocation6], 4
      %s27 = int_to_ptr.vmem [resolvable:$true] %s26
      %32 = dma.hbm_to_vmem [thread:$0]  %s25, 1024, %s27, [#allocation7], 64, 64, 4
    $region5: #{tpu_custom_call.1} parent=1 // pred_fallthru
      _
    // Predicated region
    $region6: #{tpu_custom_call.1} parent=1 // pred_check
      _
    $region7: #{tpu_custom_call.1} parent=1 // pred_check_branch
      %34 = sbr.rel (0) target = $region9
    $region8: #{tpu_custom_call.1} parent=1 // pred_region
      %s36 = ssub.s32 1024, 1024
      %37 = vsyncadd [#allocation10], %s36
      %s38 = sshll.u32 [#allocation9], 4
      %s39 = int_to_ptr.vmem [resolvable:$true] %s38
      %44 = dma.hbm_to_vmem [thread:$0]  %s3, 1024, %s39, [#allocation10], 64, 64, 4
    $region9: #{tpu_custom_call.1} parent=1 // pred_fallthru
      _
    // Predicated region
    $region10: #{tpu_custom_call.1} parent=1 // pred_check
      _
    $region11: #{tpu_custom_call.1} parent=1 // pred_check_branch
      %46 = sbr.rel (0) target = $region13
    $region12: #{tpu_custom_call.1} parent=1 // pred_region
      _
    $region13: #{tpu_custom_call.1} parent=1 // pred_fallthru
      _
    // Predicated region
    $region14: #{tpu_custom_call.1} parent=1 // pred_check
      _
    $region15: #{tpu_custom_call.1} parent=1 // pred_check_branch
      %48 = sbr.rel (0) target = $region17
    $region16: #{tpu_custom_call.1} parent=1 // pred_region
      %49 = dma.done [#allocation7], 1024
    $region17: #{tpu_custom_call.1} parent=1 // pred_fallthru
      _
    // Predicated region
    $region18: #{tpu_custom_call.1} parent=1 // pred_check
      _
    $region19: #{tpu_custom_call.1} parent=1 // pred_check_branch
      %51 = sbr.rel (0) target = $region21
    $region20: #{tpu_custom_call.1} parent=1 // pred_region
      %52 = dma.done [#allocation10], 1024
    $region21: #{tpu_custom_call.1} parent=1 // pred_fallthru
      _
    %s53 = sadd.s32 0, 0
    %s54 = smul.u32 %s53, 128
    %s55 = sadd.s32 %s54, 0
    %s56 = sld [smem:[#allocation4 + %s55]]
    %p58 = scmp.eq.s32.totalorder 0, 0
    // Predicated region
    $region22: #{tpu_custom_call.1} parent=1 // pred_check
      %p59 = pneg %p58
    $region23: #{tpu_custom_call.1} parent=1 // pred_check_branch
      %61 = sbr.rel (%p59) target = $region25
    $region24: #{tpu_custom_call.1} parent=1 // pred_region
      %62 = vst [vmem:[#allocation2] sm:$0xff] 0.0
      %63 = vst [vmem:[#allocation2 + $0x8] sm:$0xff] 0.0
      %64 = vst [vmem:[#allocation2 + $0x10] sm:$0xff] 0.0
      %65 = vst [vmem:[#allocation2 + $0x18] sm:$0xff] 0.0
      %66 = vst [vmem:[#allocation2 + $0x20] sm:$0xff] 0.0
      %67 = vst [vmem:[#allocation2 + $0x28] sm:$0xff] 0.0
      %68 = vst [vmem:[#allocation2 + $0x30] sm:$0xff] 0.0
      %69 = vst [vmem:[#allocation2 + $0x38] sm:$0xff] 0.0
      %70 = vst [vmem:[#allocation2 + $0x40] sm:$0xff] 0.0
      %71 = vst [vmem:[#allocation2 + $0x48] sm:$0xff] 0.0
      %72 = vst [vmem:[#allocation2 + $0x50] sm:$0xff] 0.0
      %73 = vst [vmem:[#allocation2 + $0x58] sm:$0xff] 0.0
      %74 = vst [vmem:[#allocation2 + $0x60] sm:$0xff] 0.0
      %75 = vst [vmem:[#allocation2 + $0x68] sm:$0xff] 0.0
      %76 = vst [vmem:[#allocation2 + $0x70] sm:$0xff] 0.0
      %77 = vst [vmem:[#allocation2 + $0x78] sm:$0xff] 0.0
    $region25: #{tpu_custom_call.1} parent=1 // pred_fallthru
      _
    %s78 = sld [smem:[#allocation5]]
    %p79 = scmp.lt.s32.totalorder 0, %s78
    // Predicated region
    $region26: #{tpu_custom_call.1} parent=1 // pred_check
      %p80 = pneg %p79
    $region27: #{tpu_custom_call.1} parent=1 // pred_check_branch
      %82 = sbr.rel (%p80) target = $region29
    $region28: #{tpu_custom_call.1} parent=1 // pred_region
      %s83 = sadd.s32 0, 0
      %s84 = smul.u32 %s83, 128
      %s85 = sadd.s32 %s84, 0
      %s86 = sld [smem:[#allocation4 + %s85]]
      %s87 = smul.u32 %s86, 128
      %s88 = sshra.s32 %s87, 3
      %s89 = sand.u32 %s87, 7
      %s90 = smul.addr %s88, 4
      %s91 = scalar_lea.vmem [#allocation9], %s90
      %v92 = vld [vmem:[%s91] sm:$0xf]
      %v93 = vld [vmem:[%s91 + $0x4] sm:$0xf]
      %v94 = vld [vmem:[%s91 + $0x8] sm:$0xf]
      %v95 = vld [vmem:[%s91 + $0xc] sm:$0xf]
      %v96 = vld [vmem:[%s91 + $0x10] sm:$0xf]
      %v97 = vld [vmem:[%s91 + $0x14] sm:$0xf]
      %v98 = vld [vmem:[%s91 + $0x18] sm:$0xf]
      %v99 = vld [vmem:[%s91 + $0x1c] sm:$0xf]
      %v100 = vld [vmem:[%s91 + $0x20] sm:$0xf]
      %v101 = vld [vmem:[%s91 + $0x24] sm:$0xf]
      %v102 = vld [vmem:[%s91 + $0x28] sm:$0xf]
      %v103 = vld [vmem:[%s91 + $0x2c] sm:$0xf]
      %v104 = vld [vmem:[%s91 + $0x30] sm:$0xf]
      %v105 = vld [vmem:[%s91 + $0x34] sm:$0xf]
      %v106 = vld [vmem:[%s91 + $0x38] sm:$0xf]
      %v107 = vld [vmem:[%s91 + $0x3c] sm:$0xf]
      %v108 = vld [vmem:[#allocation2] sm:$0xff]
      %v109 = vld [vmem:[#allocation2 + $0x8] sm:$0xff]
      %v110 = vld [vmem:[#allocation2 + $0x10] sm:$0xff]
      %v111 = vld [vmem:[#allocation2 + $0x18] sm:$0xff]
      %v112 = vld [vmem:[#allocation2 + $0x20] sm:$0xff]
      %v113 = vld [vmem:[#allocation2 + $0x28] sm:$0xff]
      %v114 = vld [vmem:[#allocation2 + $0x30] sm:$0xff]
      %v115 = vld [vmem:[#allocation2 + $0x38] sm:$0xff]
      %v116 = vld [vmem:[#allocation2 + $0x40] sm:$0xff]
      %v117 = vld [vmem:[#allocation2 + $0x48] sm:$0xff]
      %v118 = vld [vmem:[#allocation2 + $0x50] sm:$0xff]
      %v119 = vld [vmem:[#allocation2 + $0x58] sm:$0xff]
      %v120 = vld [vmem:[#allocation2 + $0x60] sm:$0xff]
      %v121 = vld [vmem:[#allocation2 + $0x68] sm:$0xff]
      %v122 = vld [vmem:[#allocation2 + $0x70] sm:$0xff]
      %v123 = vld [vmem:[#allocation2 + $0x78] sm:$0xff]
      %v124 = vld [vmem:[#allocation6] sm:$0xf]
      %v125 = vld [vmem:[#allocation6 + $0x4] sm:$0xf]
      %v126 = vld [vmem:[#allocation6 + $0x8] sm:$0xf]
      %v127 = vld [vmem:[#allocation6 + $0xc] sm:$0xf]
      %v128 = vld [vmem:[#allocation6 + $0x10] sm:$0xf]
      %v129 = vld [vmem:[#allocation6 + $0x14] sm:$0xf]
      %v130 = vld [vmem:[#allocation6 + $0x18] sm:$0xf]
      %v131 = vld [vmem:[#allocation6 + $0x1c] sm:$0xf]
      %v132 = vld [vmem:[#allocation6 + $0x20] sm:$0xf]
      %v133 = vld [vmem:[#allocation6 + $0x24] sm:$0xf]
      %v134 = vld [vmem:[#allocation6 + $0x28] sm:$0xf]
      %v135 = vld [vmem:[#allocation6 + $0x2c] sm:$0xf]
      %v136 = vld [vmem:[#allocation6 + $0x30] sm:$0xf]
      %v137 = vld [vmem:[#allocation6 + $0x34] sm:$0xf]
      %v138 = vld [vmem:[#allocation6 + $0x38] sm:$0xf]
      %v139 = vld [vmem:[#allocation6 + $0x3c] sm:$0xf]
      %v156 = vunpack.c.l.b16 %v124
      %v157 = vunpack.c.l.b16 %v125
      %v158 = vunpack.c.l.b16 %v126
      %v159 = vunpack.c.l.b16 %v127
      %v160 = vunpack.c.l.b16 %v128
      %v161 = vunpack.c.l.b16 %v129
      %v162 = vunpack.c.l.b16 %v130
      %v163 = vunpack.c.l.b16 %v131
      %v164 = vunpack.c.l.b16 %v132
      %v165 = vunpack.c.l.b16 %v133
      %v166 = vunpack.c.l.b16 %v134
      %v167 = vunpack.c.l.b16 %v135
      %v168 = vunpack.c.l.b16 %v136
      %v169 = vunpack.c.l.b16 %v137
      %v170 = vunpack.c.l.b16 %v138
      %v171 = vunpack.c.l.b16 %v139
      %v172 = vpack.c.b16 %v157, %v156
      %v173 = vpack.c.b16 %v159, %v158
      %v174 = vpack.c.b16 %v161, %v160
      %v175 = vpack.c.b16 %v163, %v162
      %v176 = vpack.c.b16 %v165, %v164
      %v177 = vpack.c.b16 %v167, %v166
      %v178 = vpack.c.b16 %v169, %v168
      %v179 = vpack.c.b16 %v171, %v170
      %v204 = vunpack.c.l.b16 %v92
      %v205 = vunpack.c.l.b16 %v93
      %v206 = vunpack.c.l.b16 %v94
      %v207 = vunpack.c.l.b16 %v95
      %v208 = vunpack.c.l.b16 %v96
      %v209 = vunpack.c.l.b16 %v97
      %v210 = vunpack.c.l.b16 %v98
      %v211 = vunpack.c.l.b16 %v99
      %v212 = vunpack.c.l.b16 %v100
      %v213 = vunpack.c.l.b16 %v101
      %v214 = vunpack.c.l.b16 %v102
      %v215 = vunpack.c.l.b16 %v103
      %v216 = vunpack.c.l.b16 %v104
      %v217 = vunpack.c.l.b16 %v105
      %v218 = vunpack.c.l.b16 %v106
      %v219 = vunpack.c.l.b16 %v107
      %v220 = vpack.c.b16 %v205, %v204
      %v221 = vpack.c.b16 %v207, %v206
      %v222 = vpack.c.b16 %v209, %v208
      %v223 = vpack.c.b16 %v211, %v210
      %v224 = vpack.c.b16 %v213, %v212
      %v225 = vpack.c.b16 %v215, %v214
      %v226 = vpack.c.b16 %v217, %v216
      %v227 = vpack.c.b16 %v219, %v218
      %236 = vmatprep.subr.bf16.mxu0 0
      %237 = vmatpush1.bf16.msra.mxu0 %v227
      %238 = vmatprep.subr.bf16.mxu0 0
      %239 = vmatpush1.bf16.msra.mxu0 %v226
      %240 = vmatprep.subr.bf16.mxu0 0
      %241 = vmatpush1.bf16.msra.mxu0 %v225
      %242 = vmatprep.subr.bf16.mxu0 0
      %243 = vmatpush1.bf16.msra.mxu0 %v224
      %244 = vmatprep.subr.bf16.mxu0 0
      %245 = vmatpush1.bf16.msra.mxu0 %v223
      %246 = vmatprep.subr.bf16.mxu0 0
      %247 = vmatpush1.bf16.msra.mxu0 %v222
      %248 = vmatprep.subr.bf16.mxu0 0
      %249 = vmatpush1.bf16.msra.mxu0 %v221
      %250 = vmatprep.subr.bf16.mxu0 0
      %251 = vmatpush1.bf16.msra.mxu0 %v220
      %252 = vmatprep.subr.bf16.mxu0 0
      %253 = vmatpush2.bf16.msra.mxu0 0
      %254 = vmatprep.subr.bf16.mxu0 0
      %255 = vmatpush2.bf16.msra.mxu0 0
      %256 = vmatprep.subr.bf16.mxu0 0
      %257 = vmatpush2.bf16.msra.mxu0 0
      %258 = vmatprep.subr.bf16.mxu0 0
      %259 = vmatpush2.bf16.msra.mxu0 0
      %260 = vmatprep.subr.bf16.mxu0 0
      %261 = vmatpush2.bf16.msra.mxu0 0
      %262 = vmatprep.subr.bf16.mxu0 0
      %263 = vmatpush2.bf16.msra.mxu0 0
      %264 = vmatprep.subr.bf16.mxu0 0
      %265 = vmatpush2.bf16.msra.mxu0 0
      %266 = vmatprep.subr.bf16.mxu0 0
      %267 = vmatpush2.bf16.msra.mxu0 0
      %268 = vmatprep.mubr.bf16.mxu0 0
      %269 = vmatmul.mubr.bf16.gmra.mxu0 %v172
      %v270 = vpop.f32.mrf.mxu0
      %v271 = vadd.f32 0.0, %v270
      %v272 = vpop.f32.mrf.mxu0
      %v273 = vpop.f32.mrf.mxu0
      %v274 = vadd.f32 0.0, %v273
      %v275 = vpop.f32.mrf.mxu0
      %276 = vmatprep.mubr.bf16.mxu0 0
      %277 = vmatmul.mubr.bf16.gmra.mxu0 %v173
      %v278 = vpop.f32.mrf.mxu0
      %v279 = vadd.f32 0.0, %v278
      %v280 = vpop.f32.mrf.mxu0
      %v281 = vpop.f32.mrf.mxu0
      %v282 = vadd.f32 0.0, %v281
      %v283 = vpop.f32.mrf.mxu0
      %284 = vmatprep.mubr.bf16.mxu0 0
      %285 = vmatmul.mubr.bf16.gmra.mxu0 %v174
      %v286 = vpop.f32.mrf.mxu0
      %v287 = vadd.f32 0.0, %v286
      %v288 = vpop.f32.mrf.mxu0
      %v289 = vpop.f32.mrf.mxu0
      %v290 = vadd.f32 0.0, %v289
      %v291 = vpop.f32.mrf.mxu0
      %292 = vmatprep.mubr.bf16.mxu0 0
      %293 = vmatmul.mubr.bf16.gmra.mxu0 %v175
      %v294 = vpop.f32.mrf.mxu0
      %v295 = vadd.f32 0.0, %v294
      %v296 = vpop.f32.mrf.mxu0
      %v297 = vpop.f32.mrf.mxu0
      %v298 = vadd.f32 0.0, %v297
      %v299 = vpop.f32.mrf.mxu0
      %300 = vmatprep.mubr.bf16.mxu0 0
      %301 = vmatmul.mubr.bf16.gmra.mxu0 %v176
      %v302 = vpop.f32.mrf.mxu0
      %v303 = vadd.f32 0.0, %v302
      %v304 = vpop.f32.mrf.mxu0
      %v305 = vpop.f32.mrf.mxu0
      %v306 = vadd.f32 0.0, %v305
      %v307 = vpop.f32.mrf.mxu0
      %308 = vmatprep.mubr.bf16.mxu0 0
      %309 = vmatmul.mubr.bf16.gmra.mxu0 %v177
      %v310 = vpop.f32.mrf.mxu0
      %v311 = vadd.f32 0.0, %v310
      %v312 = vpop.f32.mrf.mxu0
      %v313 = vpop.f32.mrf.mxu0
      %v314 = vadd.f32 0.0, %v313
      %v315 = vpop.f32.mrf.mxu0
      %316 = vmatprep.mubr.bf16.mxu0 0
      %317 = vmatmul.mubr.bf16.gmra.mxu0 %v178
      %v318 = vpop.f32.mrf.mxu0
      %v319 = vadd.f32 0.0, %v318
      %v320 = vpop.f32.mrf.mxu0
      %v321 = vpop.f32.mrf.mxu0
      %v322 = vadd.f32 0.0, %v321
      %v323 = vpop.f32.mrf.mxu0
      %324 = vmatprep.mubr.bf16.mxu0 0
      %325 = vmatmul.mubr.bf16.gmra.mxu0 %v179
      %v326 = vpop.f32.mrf.mxu0
      %v327 = vadd.f32 0.0, %v326
      %v328 = vpop.f32.mrf.mxu0
      %v329 = vpop.f32.mrf.mxu0
      %v330 = vadd.f32 0.0, %v329
      %v331 = vpop.f32.mrf.mxu0
      %332 = vdwg.mxu0
      %v333 = vadd.f32 %v108, %v271
      %v334 = vadd.f32 %v109, %v274
      %v335 = vadd.f32 %v110, %v279
      %v336 = vadd.f32 %v111, %v282
      %v337 = vadd.f32 %v112, %v287
      %v338 = vadd.f32 %v113, %v290
      %v339 = vadd.f32 %v114, %v295
      %v340 = vadd.f32 %v115, %v298
      %v341 = vadd.f32 %v116, %v303
      %v342 = vadd.f32 %v117, %v306
      %v343 = vadd.f32 %v118, %v311
      %v344 = vadd.f32 %v119, %v314
      %v345 = vadd.f32 %v120, %v319
      %v346 = vadd.f32 %v121, %v322
      %v347 = vadd.f32 %v122, %v327
      %v348 = vadd.f32 %v123, %v330
      %349 = vst [vmem:[#allocation2] sm:$0xff] %v333
      %350 = vst [vmem:[#allocation2 + $0x8] sm:$0xff] %v334
      %351 = vst [vmem:[#allocation2 + $0x10] sm:$0xff] %v335
      %352 = vst [vmem:[#allocation2 + $0x18] sm:$0xff] %v336
      %353 = vst [vmem:[#allocation2 + $0x20] sm:$0xff] %v337
      %354 = vst [vmem:[#allocation2 + $0x28] sm:$0xff] %v338
      %355 = vst [vmem:[#allocation2 + $0x30] sm:$0xff] %v339
      %356 = vst [vmem:[#allocation2 + $0x38] sm:$0xff] %v340
      %357 = vst [vmem:[#allocation2 + $0x40] sm:$0xff] %v341
      %358 = vst [vmem:[#allocation2 + $0x48] sm:$0xff] %v342
      %359 = vst [vmem:[#allocation2 + $0x50] sm:$0xff] %v343
      %360 = vst [vmem:[#allocation2 + $0x58] sm:$0xff] %v344
      %361 = vst [vmem:[#allocation2 + $0x60] sm:$0xff] %v345
      %362 = vst [vmem:[#allocation2 + $0x68] sm:$0xff] %v346
      %363 = vst [vmem:[#allocation2 + $0x70] sm:$0xff] %v347
      %364 = vst [vmem:[#allocation2 + $0x78] sm:$0xff] %v348
    $region29: #{tpu_custom_call.1} parent=1 // pred_fallthru
      _
    // Predicated region
    $region30: #{tpu_custom_call.1} parent=1 // pred_check
      %p365 = pneg %p58
    $region31: #{tpu_custom_call.1} parent=1 // pred_check_branch
      %367 = sbr.rel (%p365) target = $region33
    $region32: #{tpu_custom_call.1} parent=1 // pred_region
      %v368 = vld [vmem:[#allocation2] sm:$0xff]
      %v369 = vld [vmem:[#allocation2 + $0x8] sm:$0xff]
      %v370 = vld [vmem:[#allocation2 + $0x10] sm:$0xff]
      %v371 = vld [vmem:[#allocation2 + $0x18] sm:$0xff]
      %v372 = vld [vmem:[#allocation2 + $0x20] sm:$0xff]
      %v373 = vld [vmem:[#allocation2 + $0x28] sm:$0xff]
      %v374 = vld [vmem:[#allocation2 + $0x30] sm:$0xff]
      %v375 = vld [vmem:[#allocation2 + $0x38] sm:$0xff]
      %v376 = vld [vmem:[#allocation2 + $0x40] sm:$0xff]
      %v377 = vld [vmem:[#allocation2 + $0x48] sm:$0xff]
      %v378 = vld [vmem:[#allocation2 + $0x50] sm:$0xff]
      %v379 = vld [vmem:[#allocation2 + $0x58] sm:$0xff]
      %v380 = vld [vmem:[#allocation2 + $0x60] sm:$0xff]
      %v381 = vld [vmem:[#allocation2 + $0x68] sm:$0xff]
      %v382 = vld [vmem:[#allocation2 + $0x70] sm:$0xff]
      %v383 = vld [vmem:[#allocation2 + $0x78] sm:$0xff]
      %v384 = vld [vmem:[%s4] sm:$0x1]
      %v386 = vlaneseq
      %v387 = vshrl.u32 %v386, 7
      %v388 = vsub.s32 0, %v387
      %v389 = vrot.slane %v384, %v388
      %v391 = vadd.f32 %v368, %v389
      %v392 = vadd.f32 %v369, %v389
      %v393 = vadd.f32 %v370, %v389
      %v394 = vadd.f32 %v371, %v389
      %v395 = vadd.f32 %v372, %v389
      %v396 = vadd.f32 %v373, %v389
      %v397 = vadd.f32 %v374, %v389
      %v398 = vadd.f32 %v375, %v389
      %v399 = vadd.f32 %v376, %v389
      %v400 = vadd.f32 %v377, %v389
      %v401 = vadd.f32 %v378, %v389
      %v402 = vadd.f32 %v379, %v389
      %v403 = vadd.f32 %v380, %v389
      %v404 = vadd.f32 %v381, %v389
      %v405 = vadd.f32 %v382, %v389
      %v406 = vadd.f32 %v383, %v389
      %v407 = vmax.f32 %v391, 0.0
      %v408 = vmax.f32 %v392, 0.0
      %v409 = vmax.f32 %v393, 0.0
      %v410 = vmax.f32 %v394, 0.0
      %v411 = vmax.f32 %v395, 0.0
      %v412 = vmax.f32 %v396, 0.0
      %v413 = vmax.f32 %v397, 0.0
      %v414 = vmax.f32 %v398, 0.0
      %v415 = vmax.f32 %v399, 0.0
      %v416 = vmax.f32 %v400, 0.0
      %v417 = vmax.f32 %v401, 0.0
      %v418 = vmax.f32 %v402, 0.0
      %v419 = vmax.f32 %v403, 0.0
      %v420 = vmax.f32 %v404, 0.0
      %v421 = vmax.f32 %v405, 0.0
      %v422 = vmax.f32 %v406, 0.0
      %v423 = vpack.c.bf16 %v408, %v407
      %v424 = vpack.c.bf16 %v410, %v409
      %v425 = vpack.c.bf16 %v412, %v411
      %v426 = vpack.c.bf16 %v414, %v413
      %v427 = vpack.c.bf16 %v416, %v415
      %v428 = vpack.c.bf16 %v418, %v417
      %v429 = vpack.c.bf16 %v420, %v419
      %v430 = vpack.c.bf16 %v422, %v421
      %v439 = vunpack.c.l.b16 %v423
      %v440 = vunpack.c.h.b16 %v423
      %v441 = vunpack.c.l.b16 %v424
      %v442 = vunpack.c.h.b16 %v424
      %v443 = vunpack.c.l.b16 %v425
      %v444 = vunpack.c.h.b16 %v425
      %v445 = vunpack.c.l.b16 %v426
      %v446 = vunpack.c.h.b16 %v426
      %v447 = vunpack.c.l.b16 %v427
      %v448 = vunpack.c.h.b16 %v427
      %v449 = vunpack.c.l.b16 %v428
      %v450 = vunpack.c.h.b16 %v428
      %v451 = vunpack.c.l.b16 %v429
      %v452 = vunpack.c.h.b16 %v429
      %v453 = vunpack.c.l.b16 %v430
      %v454 = vunpack.c.h.b16 %v430
      %v455 = vpack.c.b16 %v439, %v439
      %v456 = vpack.c.b16 %v440, %v440
      %v457 = vpack.c.b16 %v441, %v441
      %v458 = vpack.c.b16 %v442, %v442
      %v459 = vpack.c.b16 %v443, %v443
      %v460 = vpack.c.b16 %v444, %v444
      %v461 = vpack.c.b16 %v445, %v445
      %v462 = vpack.c.b16 %v446, %v446
      %v463 = vpack.c.b16 %v447, %v447
      %v464 = vpack.c.b16 %v448, %v448
      %v465 = vpack.c.b16 %v449, %v449
      %v466 = vpack.c.b16 %v450, %v450
      %v467 = vpack.c.b16 %v451, %v451
      %v468 = vpack.c.b16 %v452, %v452
      %v469 = vpack.c.b16 %v453, %v453
      %v470 = vpack.c.b16 %v454, %v454
      %487 = vst [vmem:[#allocation11] sm:$0xf] %v455
      %488 = vst [vmem:[#allocation11 + $0x4] sm:$0xf] %v456
      %489 = vst [vmem:[#allocation11 + $0x8] sm:$0xf] %v457
      %490 = vst [vmem:[#allocation11 + $0xc] sm:$0xf] %v458
      %491 = vst [vmem:[#allocation11 + $0x10] sm:$0xf] %v459
      %492 = vst [vmem:[#allocation11 + $0x14] sm:$0xf] %v460
      %493 = vst [vmem:[#allocation11 + $0x18] sm:$0xf] %v461
      %494 = vst [vmem:[#allocation11 + $0x1c] sm:$0xf] %v462
      %495 = vst [vmem:[#allocation11 + $0x20] sm:$0xf] %v463
      %496 = vst [vmem:[#allocation11 + $0x24] sm:$0xf] %v464
      %497 = vst [vmem:[#allocation11 + $0x28] sm:$0xf] %v465
      %498 = vst [vmem:[#allocation11 + $0x2c] sm:$0xf] %v466
      %499 = vst [vmem:[#allocation11 + $0x30] sm:$0xf] %v467
      %500 = vst [vmem:[#allocation11 + $0x34] sm:$0xf] %v468
      %501 = vst [vmem:[#allocation11 + $0x38] sm:$0xf] %v469
      %502 = vst [vmem:[#allocation11 + $0x3c] sm:$0xf] %v470
    $region33: #{tpu_custom_call.1} parent=1 // pred_fallthru
      _
    // Predicated region
    $region34: #{tpu_custom_call.1} parent=1 // pred_check
      _
    $region35: #{tpu_custom_call.1} parent=1 // pred_check_branch
      %504 = sbr.rel (0) target = $region37
    $region36: #{tpu_custom_call.1} parent=1 // pred_region
      %s506 = ssub.s32 1024, 1024
      %507 = vsyncadd [#allocation8], %s506
      %s508 = sshll.u32 [#allocation11], 4
      %s509 = int_to_ptr.vmem [resolvable:$true] %s508
      %514 = dma.vmem_to_hbm [thread:$0]  %s509, 1024, %s5, [#allocation8], 64, 64, 4
    $region37: #{tpu_custom_call.1} parent=1 // pred_fallthru
      _
    // Predicated region
    $region38: #{tpu_custom_call.1} parent=1 // pred_check
      _
    $region39: #{tpu_custom_call.1} parent=1 // pred_check_branch
      %516 = sbr.rel (0) target = $region41
    $region40: #{tpu_custom_call.1} parent=1 // pred_region
      %517 = dma.done [#allocation8], 1024
    $region41: #{tpu_custom_call.1} parent=1 // pred_fallthru
      _
    %518 = vsyncpa [#allocation7], 1
    %519 = vsyncpa [#allocation10], 1
    %520 = vsyncpa [#allocation8], 1

</llo_original>
